<compile_context>
chip_gen: v6e
topology: v6e:2x2x1
jax: 0.10.0
libtpu: 0.0.40
codegen_flags: <defaults>
</compile_context>

<pallas_src>
import functools

import jax
import jax.numpy as jnp
from jax.experimental import pallas as pl
from jax.experimental.pallas import tpu as pltpu


# ---------------------------------------------------------------------------
# Kernel
# ---------------------------------------------------------------------------
def _mlp_kernel(num_layers, *refs):
    """refs = (x_ref, w0, b0, w1, b1, ..., w_{L-1}, b_{L-1}, o_ref).

    x_ref: [tb, K_pad] f32, w_i: [in_pad, out_pad] bf16, b_i: [1, out_pad] f32.
    """
    x_ref = refs[0]
    o_ref = refs[-1]
    param_refs = refs[1:-1]

    h = x_ref[...]                                   # f32 activations
    for layer in range(num_layers):
        w = param_refs[2 * layer][...]               # bf16 weight tile
        b = param_refs[2 * layer + 1][...]           # f32 bias row
        acc = jnp.dot(h.astype(jnp.bfloat16), w,
                      preferred_element_type=jnp.float32)
        h = acc + b                                  # bias add in f32
        if layer < num_layers - 1:                   # ReLU on all but last
            h = jnp.maximum(h, 0.0)
    o_ref[...] = h.astype(o_ref.dtype)


# ---------------------------------------------------------------------------
# Wrapper
# ---------------------------------------------------------------------------
def _round_up(n, m):
    return ((n + m - 1) // m) * m


def _pad_params(params):
    """Zero-pad each layer's in/out feature dims up to a multiple of 128 and
    cast weights to bf16 (biases stay f32)."""
    padded = []
    for w, b in params:
        fi, fo = w.shape
        fi_p, fo_p = _round_up(fi, 128), _round_up(fo, 128)
        w_p = jnp.zeros((fi_p, fo_p), jnp.bfloat16)
        w_p = w_p.at[:fi, :fo].set(w.astype(jnp.bfloat16))
        b_p = jnp.zeros((1, fo_p), jnp.float32).at[:, :fo].set(b)
        padded.append((w_p, b_p))
    return padded


def _choose_batch_tile(batch_padded):
    """batch_padded is a multiple of 8.  Pick the largest tile <= 1024 that
    divides it and still gives >= 2 grid steps (pipeline overlap, and v7x
    megacore sharding of the parallel axis)."""
    for tb in (1024, 512, 256, 128, 64, 32, 16, 8):
        if tb <= batch_padded // 2 and batch_padded % tb == 0:
            return tb
    return batch_padded                   # single block (tiny batch)


def mlp_forward(x, params, *, batch_tile=None):
    """Fused MLP forward.

    x:      [B, num_inputs] float32
    params: list of (W [in, out] f32, b [1, out] f32), applied in order.
    Returns [B, num_candidates] float32.
    """
    x = x.astype(jnp.float32)
    B, num_in = x.shape
    num_layers = len(params)
    out_dim = params[-1][0].shape[1]

    padded = _pad_params(params)
    k_pad = padded[0][0].shape[0]
    out_pad = padded[-1][0].shape[1]

    # Pad batch to a multiple of 8 and features up to the padded contraction
    # width (sliced back out at the end).
    b_pad = _round_up(B, 8)
    tb = _choose_batch_tile(b_pad) if batch_tile is None else batch_tile
    assert b_pad % tb == 0 and tb % 8 == 0

    x_p = x
    if (b_pad, k_pad) != (B, num_in):
        x_p = jnp.zeros((b_pad, k_pad), jnp.float32).at[:B, :num_in].set(x)

    flat_params = []
    in_specs = [pl.BlockSpec((tb, k_pad), lambda i: (i, 0))]
    for w, b in padded:
        flat_params.append(w)
        flat_params.append(b)
        in_specs.append(pl.BlockSpec(w.shape, lambda i: (0, 0)))   # resident
        in_specs.append(pl.BlockSpec(b.shape, lambda i: (0, 0)))   # resident

    # Advisory cost estimate for XLA scheduling.
    dims = [k_pad] + [w.shape[1] for w, _ in padded]
    flops = sum(2 * b_pad * dims[i] * dims[i + 1] for i in range(num_layers))
    param_bytes = sum(w.size * 2 + b.size * 4 for w, b in padded)
    bytes_accessed = x_p.size * 4 + b_pad * out_pad * 4 + param_bytes

    # VMEM: double-buffered x/out tiles + (double-buffered) resident params,
    # plus a little headroom.  Clamp well under the v7x 64 MiB physical VMEM.
    vmem_est = 2 * (tb * k_pad * 4 + tb * out_pad * 4) + 2 * param_bytes
    vmem_limit = int(min(48 * 2**20, max(vmem_est + (4 << 20), 16 * 2**20)))

    out_p = pl.pallas_call(
        functools.partial(_mlp_kernel, num_layers),
        out_shape=jax.ShapeDtypeStruct((b_pad, out_pad), jnp.float32),
        grid_spec=pltpu.PrefetchScalarGridSpec(
            num_scalar_prefetch=0,
            grid=(b_pad // tb,),
            in_specs=in_specs,
            out_specs=pl.BlockSpec((tb, out_pad), lambda i: (i, 0)),
        ),
        compiler_params=pltpu.CompilerParams(
            dimension_semantics=("parallel",),
            vmem_limit_bytes=vmem_limit,
        ),
        cost_estimate=pl.CostEstimate(
            flops=flops, transcendentals=0, bytes_accessed=bytes_accessed),
    )(x_p, *flat_params)

    return out_p[:B, :out_dim]            # drop batch + lane padding


# ---------------------------------------------------------------------------
# Param init (matches reset(): PyTorch nn.Linear default uniform(+-1/sqrt(fan_in)))
# ---------------------------------------------------------------------------
def init_mlp_params(key, num_inputs, nodes_per_layer, num_hidden_layers,
                    num_candidates):
    dims = ([num_inputs] + [nodes_per_layer] * (num_hidden_layers + 1)
            + [num_candidates])
    params = []
    for i in range(len(dims) - 1):
        fan_in, fan_out = dims[i], dims[i + 1]
        key, kw, kb = jax.random.split(key, 3)
        bound = 1.0 / (fan_in ** 0.5)
        w = jax.random.uniform(kw, (fan_in, fan_out), jnp.float32, -bound, bound)
        b = jax.random.uniform(kb, (1, fan_out), jnp.float32, -bound, bound)
        params.append((w, b))
    return params


def mlp_reference(x, params):
    """Pure-JAX f32 reference of MultiWinnerVotingRule.forward."""
    h = x
    for i, (w, b) in enumerate(params):
        h = h @ w + b
        if i < len(params) - 1:
            h = jnp.maximum(h, 0.0)
    return h


# TODO(synk): trainmodel / predict_winner / save_model are host-side training &
# I/O utilities (DataLoader, Adam, torch.save) with no Pallas equivalent; only
# forward() is implemented here.

if __name__ == "__main__":
    # Small, module-consistent shapes.
    num_candidates = 6
    num_voters = 20          # not used by forward()
    num_winners = 2          # not used by forward()
    num_features = 36        # kwargs['num_features']
    hidden_layers = 2        # config['hidden_layers']
    hidden_nodes = 64        # config['hidden_nodes']
    batch = 64               # -> tb=32, 2 grid steps

    key = jax.random.PRNGKey(0)
    key, kx = jax.random.split(key)
    x = jax.random.normal(kx, (batch, num_features), dtype=jnp.float32)

    params = init_mlp_params(key, num_features, hidden_nodes, hidden_layers,
                             num_candidates)

    out = mlp_forward(x, params)
    out = jax.block_until_ready(out)

    ref = mlp_reference(x, params)
    assert out.shape == (batch, num_candidates)
    # bf16 weights/activations on the MXU vs f32 reference -> loose tolerance.
    assert jnp.allclose(out, ref, atol=2e-2, rtol=2e-2), "mismatch vs reference"

    print("KERNEL_OK")
</pallas_src>

<mosaic_0001>
module attributes {stable_mosaic.version = 11 : i64} {
  func.func @_mlp_kernel(%arg0: i32, %arg1: memref<32x128xf32, #tpu.memory_space<vmem>>, %arg2: memref<128x128xbf16, #tpu.memory_space<vmem>>, %arg3: memref<1x128xf32, #tpu.memory_space<vmem>>, %arg4: memref<128x128xbf16, #tpu.memory_space<vmem>>, %arg5: memref<1x128xf32, #tpu.memory_space<vmem>>, %arg6: memref<128x128xbf16, #tpu.memory_space<vmem>>, %arg7: memref<1x128xf32, #tpu.memory_space<vmem>>, %arg8: memref<128x128xbf16, #tpu.memory_space<vmem>>, %arg9: memref<1x128xf32, #tpu.memory_space<vmem>>, %arg10: memref<32x128xf32, #tpu.memory_space<vmem>>) attributes {dimension_semantics = [#tpu.dimension_semantics<parallel>], iteration_bounds = array<i64: 2>, scalar_prefetch = 0 : i64, scratch_operands = 0 : i64, tpu.core_type = #tpu.core_type<tc>, window_params = [{transform_indices = @transform_0, window_bounds = array<i64: 32, 128>}, {pipeline_mode = #tpu.pipeline_mode<synchronous>, transform_indices = @transform_1, window_bounds = array<i64: 128, 128>}, {pipeline_mode = #tpu.pipeline_mode<synchronous>, transform_indices = @transform_2, window_bounds = array<i64: 1, 128>}, {pipeline_mode = #tpu.pipeline_mode<synchronous>, transform_indices = @transform_3, window_bounds = array<i64: 128, 128>}, {pipeline_mode = #tpu.pipeline_mode<synchronous>, transform_indices = @transform_4, window_bounds = array<i64: 1, 128>}, {pipeline_mode = #tpu.pipeline_mode<synchronous>, transform_indices = @transform_5, window_bounds = array<i64: 128, 128>}, {pipeline_mode = #tpu.pipeline_mode<synchronous>, transform_indices = @transform_6, window_bounds = array<i64: 1, 128>}, {pipeline_mode = #tpu.pipeline_mode<synchronous>, transform_indices = @transform_7, window_bounds = array<i64: 128, 128>}, {pipeline_mode = #tpu.pipeline_mode<synchronous>, transform_indices = @transform_8, window_bounds = array<i64: 1, 128>}, {transform_indices = @transform_9, window_bounds = array<i64: 32, 128>}]} {
    %c0 = arith.constant 0 : index
    %c0_0 = arith.constant 0 : index
    %0 = vector.load %arg1[%c0, %c0_0] : memref<32x128xf32, #tpu.memory_space<vmem>>, vector<32x128xf32>
    %c0_1 = arith.constant 0 : index
    %c0_2 = arith.constant 0 : index
    %1 = vector.load %arg2[%c0_1, %c0_2] : memref<128x128xbf16, #tpu.memory_space<vmem>>, vector<128x128xbf16>
    %c0_3 = arith.constant 0 : index
    %c0_4 = arith.constant 0 : index
    %2 = vector.load %arg3[%c0_3, %c0_4] : memref<1x128xf32, #tpu.memory_space<vmem>>, vector<1x128xf32>
    %3 = arith.truncf %0 : vector<32x128xf32> to vector<32x128xbf16>
    %cst = arith.constant dense<0.000000e+00> : vector<32x128xf32>
    %4 = tpu.matmul %3, %1, %cst {dimension_numbers = #tpu.dot_dimension_numbers<[1], [0], [0], [1], [0, 0, 1, 1], [], []>} : vector<32x128xbf16>, vector<128x128xbf16>, vector<32x128xf32> -> vector<32x128xf32>
    %5 = vector.broadcast %2 : vector<1x128xf32> to vector<32x128xf32>
    %6 = arith.addf %4, %5 : vector<32x128xf32>
    %cst_5 = arith.constant 0.000000e+00 : f32
    %7 = vector.broadcast %cst_5 : f32 to vector<32x128xf32>
    %8 = arith.maximumf %6, %7 : vector<32x128xf32>
    %c0_6 = arith.constant 0 : index
    %c0_7 = arith.constant 0 : index
    %9 = vector.load %arg4[%c0_6, %c0_7] : memref<128x128xbf16, #tpu.memory_space<vmem>>, vector<128x128xbf16>
    %c0_8 = arith.constant 0 : index
    %c0_9 = arith.constant 0 : index
    %10 = vector.load %arg5[%c0_8, %c0_9] : memref<1x128xf32, #tpu.memory_space<vmem>>, vector<1x128xf32>
    %11 = arith.truncf %8 : vector<32x128xf32> to vector<32x128xbf16>
    %cst_10 = arith.constant dense<0.000000e+00> : vector<32x128xf32>
    %12 = tpu.matmul %11, %9, %cst_10 {dimension_numbers = #tpu.dot_dimension_numbers<[1], [0], [0], [1], [0, 0, 1, 1], [], []>} : vector<32x128xbf16>, vector<128x128xbf16>, vector<32x128xf32> -> vector<32x128xf32>
    %13 = vector.broadcast %10 : vector<1x128xf32> to vector<32x128xf32>
    %14 = arith.addf %12, %13 : vector<32x128xf32>
    %cst_11 = arith.constant 0.000000e+00 : f32
    %15 = vector.broadcast %cst_11 : f32 to vector<32x128xf32>
    %16 = arith.maximumf %14, %15 : vector<32x128xf32>
    %c0_12 = arith.constant 0 : index
    %c0_13 = arith.constant 0 : index
    %17 = vector.load %arg6[%c0_12, %c0_13] : memref<128x128xbf16, #tpu.memory_space<vmem>>, vector<128x128xbf16>
    %c0_14 = arith.constant 0 : index
    %c0_15 = arith.constant 0 : index
    %18 = vector.load %arg7[%c0_14, %c0_15] : memref<1x128xf32, #tpu.memory_space<vmem>>, vector<1x128xf32>
    %19 = arith.truncf %16 : vector<32x128xf32> to vector<32x128xbf16>
    %cst_16 = arith.constant dense<0.000000e+00> : vector<32x128xf32>
    %20 = tpu.matmul %19, %17, %cst_16 {dimension_numbers = #tpu.dot_dimension_numbers<[1], [0], [0], [1], [0, 0, 1, 1], [], []>} : vector<32x128xbf16>, vector<128x128xbf16>, vector<32x128xf32> -> vector<32x128xf32>
    %21 = vector.broadcast %18 : vector<1x128xf32> to vector<32x128xf32>
    %22 = arith.addf %20, %21 : vector<32x128xf32>
    %cst_17 = arith.constant 0.000000e+00 : f32
    %23 = vector.broadcast %cst_17 : f32 to vector<32x128xf32>
    %24 = arith.maximumf %22, %23 : vector<32x128xf32>
    %c0_18 = arith.constant 0 : index
    %c0_19 = arith.constant 0 : index
    %25 = vector.load %arg8[%c0_18, %c0_19] : memref<128x128xbf16, #tpu.memory_space<vmem>>, vector<128x128xbf16>
    %c0_20 = arith.constant 0 : index
    %c0_21 = arith.constant 0 : index
    %26 = vector.load %arg9[%c0_20, %c0_21] : memref<1x128xf32, #tpu.memory_space<vmem>>, vector<1x128xf32>
    %27 = arith.truncf %24 : vector<32x128xf32> to vector<32x128xbf16>
    %cst_22 = arith.constant dense<0.000000e+00> : vector<32x128xf32>
    %28 = tpu.matmul %27, %25, %cst_22 {dimension_numbers = #tpu.dot_dimension_numbers<[1], [0], [0], [1], [0, 0, 1, 1], [], []>} : vector<32x128xbf16>, vector<128x128xbf16>, vector<32x128xf32> -> vector<32x128xf32>
    %29 = vector.broadcast %26 : vector<1x128xf32> to vector<32x128xf32>
    %30 = arith.addf %28, %29 : vector<32x128xf32>
    %c0_23 = arith.constant 0 : index
    %c0_24 = arith.constant 0 : index
    %31 = vector.load %arg10[%c0_23, %c0_24] : memref<32x128xf32, #tpu.memory_space<vmem>>, vector<32x128xf32>
    tpu.vector_store %arg10[%c0_23, %c0_24], %30 {strides = array<i32>} : memref<32x128xf32, #tpu.memory_space<vmem>>, vector<32x128xf32>,
    return
  }
  func.func @transform_0(%arg0: i32) -> (i32, i32) {
    %c0_i32 = arith.constant 0 : i32
    %c0_i32_0 = arith.constant 0 : i32
    return %arg0, %c0_i32 : i32, i32
  }
  func.func @transform_1(%arg0: i32) -> (i32, i32) {
    %c0_i32 = arith.constant 0 : i32
    %c0_i32_0 = arith.constant 0 : i32
    %c0_i32_1 = arith.constant 0 : i32
    return %c0_i32, %c0_i32_0 : i32, i32
  }
  func.func @transform_2(%arg0: i32) -> (i32, i32) {
    %c0_i32 = arith.constant 0 : i32
    %c0_i32_0 = arith.constant 0 : i32
    %c0_i32_1 = arith.constant 0 : i32
    return %c0_i32, %c0_i32_0 : i32, i32
  }
  func.func @transform_3(%arg0: i32) -> (i32, i32) {
    %c0_i32 = arith.constant 0 : i32
    %c0_i32_0 = arith.constant 0 : i32
    %c0_i32_1 = arith.constant 0 : i32
    return %c0_i32, %c0_i32_0 : i32, i32
  }
  func.func @transform_4(%arg0: i32) -> (i32, i32) {
    %c0_i32 = arith.constant 0 : i32
    %c0_i32_0 = arith.constant 0 : i32
    %c0_i32_1 = arith.constant 0 : i32
    return %c0_i32, %c0_i32_0 : i32, i32
  }
  func.func @transform_5(%arg0: i32) -> (i32, i32) {
    %c0_i32 = arith.constant 0 : i32
    %c0_i32_0 = arith.constant 0 : i32
    %c0_i32_1 = arith.constant 0 : i32
    return %c0_i32, %c0_i32_0 : i32, i32
  }
  func.func @transform_6(%arg0: i32) -> (i32, i32) {
    %c0_i32 = arith.constant 0 : i32
    %c0_i32_0 = arith.constant 0 : i32
    %c0_i32_1 = arith.constant 0 : i32
    return %c0_i32, %c0_i32_0 : i32, i32
  }
  func.func @transform_7(%arg0: i32) -> (i32, i32) {
    %c0_i32 = arith.constant 0 : i32
    %c0_i32_0 = arith.constant 0 : i32
    %c0_i32_1 = arith.constant 0 : i32
    return %c0_i32, %c0_i32_0 : i32, i32
  }
  func.func @transform_8(%arg0: i32) -> (i32, i32) {
    %c0_i32 = arith.constant 0 : i32
    %c0_i32_0 = arith.constant 0 : i32
    %c0_i32_1 = arith.constant 0 : i32
    return %c0_i32, %c0_i32_0 : i32, i32
  }
  func.func @transform_9(%arg0: i32) -> (i32, i32) {
    %c0_i32 = arith.constant 0 : i32
    %c0_i32_0 = arith.constant 0 : i32
    return %arg0, %c0_i32 : i32, i32
  }
}

</mosaic_0001>

<llo_original>
// kernel: tpu_custom_call.1
$region0: #{tpu_custom_call.1}
  #allocation0 [shape = 'u32[]', space=smem, size = 0x4, offset = 0x4, fixed_abs, tag = 'smem constant byte address 0x4 - core index']
  #allocation1 [shape = 'u32[144,128]{1,0:T(1,128)}', space=vmem, size = 0x12000, scoped, tag = 'internal scratch']
  %s0 = inlined_call_operand.hbm [shape: f32[64,128], index: 0, kind: input, shape index: {}]
  %s1 = inlined_call_operand.hbm [shape: bf16[128,128], index: 1, kind: input, shape index: {}]
  %s2 = inlined_call_operand.vmem [shape: f32[1,128], index: 2, kind: input, shape index: {}]
  %s3 = inlined_call_operand.hbm [shape: bf16[128,128], index: 3, kind: input, shape index: {}]
  %s4 = inlined_call_operand.vmem [shape: f32[1,128], index: 4, kind: input, shape index: {}]
  %s5 = inlined_call_operand.hbm [shape: bf16[128,128], index: 5, kind: input, shape index: {}]
  %s6 = inlined_call_operand.vmem [shape: f32[1,128], index: 6, kind: input, shape index: {}]
  %s7 = inlined_call_operand.hbm [shape: bf16[128,128], index: 7, kind: input, shape index: {}]
  %s8 = inlined_call_operand.vmem [shape: f32[1,128], index: 8, kind: input, shape index: {}]
  %s9 = inlined_call_operand.hbm [shape: f32[64,128], index: 9, kind: output, shape index: {}]
  %s10 = sld [smem:[#allocation0]]
  $region89: #{tpu_custom_call.1} parent=0
    _
  %s12 = ssub.s32 1, %s10
  %s13 = scalar_select 0, %s12, %s10
  $region1: #{tpu_custom_call.1} parent=0
    #allocation2 [shape = 'u8[32768]{0}', space=vmem, size = 0x8000, scoped, tag = 'input window, operand 0']
    #allocation3 [shape = 's32[2]{0}', space=sflag, size = 0x8, scoped, tag = 'scoped memory for tpu_custom_call.1']
    #allocation4 [shape = 's32[2]{0}', space=sflag, size = 0x8, scoped, tag = 'scoped memory for tpu_custom_call.1']
    #allocation5 [shape = 'u8[32768]{0}', space=vmem, size = 0x8000, scoped, tag = 'input window, operand 1, single buffered']
    #allocation6 [shape = 's32[1]{0}', space=sflag, size = 0x4, scoped, tag = 'scoped memory for tpu_custom_call.1']
    #allocation7 [shape = 'u8[32768]{0}', space=vmem, size = 0x8000, scoped, tag = 'input window, operand 3, single buffered']
    #allocation8 [shape = 'u8[32768]{0}', space=vmem, size = 0x8000, scoped, tag = 'input window, operand 5, single buffered']
    #allocation9 [shape = 's32[1]{0}', space=sflag, size = 0x4, scoped, tag = 'scoped memory for tpu_custom_call.1']
    #allocation10 [shape = 'u8[32768]{0}', space=vmem, size = 0x8000, scoped, tag = 'input window, operand 7, single buffered']
    #allocation11 [shape = 'u8[32768]{0}', space=vmem, size = 0x8000, scoped, tag = 'output window, operand 0']
    %14 = vsyncpa [#allocation3], 0
    %s15 = scalar_lea.sflag [#allocation3], 1
    %16 = vsyncpa %s15, 0
    %17 = vsyncpa [#allocation6], 0
    %18 = vsyncpa [#allocation9], 0
    %19 = vsyncpa [#allocation4], 0
    %s20 = scalar_lea.sflag [#allocation4], 1
    %21 = vsyncpa %s20, 0
    loop: start=0, step=1, limit=4
    $region2: #{tpu_custom_call.1} parent=1 // loop_pre_header
      _
    $region3: #{tpu_custom_call.1} parent=1 // loop_header
      %s23 = sphi 0, %s27
      %p24 = scmp.ge.s32.totalorder %s23, 4
      %s33 = sphi 0, %s35
      %s36 = sphi 0, %s33
      %s37 = sphi 0, %s36
      %s53 = sphi 0, %s37
      %s57 = sphi 0, %s57
      %s59 = sphi 0, %s57
      %s60 = sphi 0, %s59
      %s74 = sphi 0, %s60
      %s78 = sphi 0, %s78
      %s80 = sphi 0, %s78
      %s81 = sphi 0, %s80
      %s95 = sphi 0, %s81
      %s99 = sphi 0, %s99
      %s101 = sphi 0, %s99
      %s102 = sphi 0, %s101
      %s116 = sphi 0, %s102
      %s120 = sphi 0, %s120
      %s122 = sphi 0, %s120
      %s123 = sphi 0, %s122
      %s137 = sphi 0, %s123
      %s141 = sphi 0, %s141
      %s143 = sphi 0, %s141
      %s144 = sphi 0, %s143
      %s158 = sphi 0, %s144
      %s162 = sphi 0, %s162
      %s164 = sphi 0, %s162
      %s165 = sphi 0, %s164
      %s179 = sphi 0, %s165
      %s183 = sphi 0, %s183
      %s185 = sphi 0, %s183
      %s186 = sphi 0, %s185
      %s200 = sphi 0, %s186
      %s204 = sphi 0, %s204
      %s206 = sphi 0, %s204
      %s207 = sphi 0, %s206
      %s221 = sphi 0, %s207
      %s227 = sphi 0, %s229
      %s230 = sphi 0, %s227
      %s231 = sphi 0, %s230
      %s247 = sphi 0, %s231
    $region4: #{tpu_custom_call.1} parent=1 // loop_header_branch
      %26 = sbr.rel (%p24) target = $region8
    $region5: #{tpu_custom_call.1} parent=1 // loop_body
      %s28 = ssub.s32 %s23, 1
      %s29 = ssub.s32 %s23, 2
      %s30 = sadd.s32 %s23, 1
      %s31 = ssub.s32 %s23, %s30
      %p32 = scmp.eq.s32.totalorder %s31, 0
      %s34 = sadd.s32 %s33, 1
      %s35 = scalar_select %p32, %s33, %s34
      %p38 = pneg %p32
      %p39 = scmp.eq.s32.totalorder %s23, 1
      %p40 = por %p38, %p39
      %p41 = scmp.ne.s32.totalorder %s33, %s36
      %p42 = scmp.eq.s32.totalorder %s23, 0
      %p43 = por %p41, %p42
      %p44 = scmp.ne.s32.totalorder %s33, %s36
      %p45 = scmp.eq.s32.totalorder %s28, 1
      %p46 = por %p44, %p45
      %p47 = scmp.ne.s32.totalorder %s36, %s37
      %p48 = scmp.eq.s32.totalorder %s28, 0
      %p49 = por %p47, %p48
      %p50 = scmp.ne.s32.totalorder %s36, %s37
      %p51 = scmp.eq.s32.totalorder %s29, 1
      %p52 = por %p50, %p51
      %p54 = scmp.ne.s32.totalorder %s37, %s53
      %p55 = scmp.eq.s32.totalorder %s29, 0
      %p56 = por %p54, %p55
      %s58 = sadd.s32 %s57, 1
      %p61 = scmp.eq.s32.totalorder %s23, 1
      %p62 = scmp.ne.s32.totalorder %s57, %s59
      %p63 = scmp.eq.s32.totalorder %s23, 0
      %p64 = por %p62, %p63
      %p65 = scmp.ne.s32.totalorder %s57, %s59
      %p66 = scmp.eq.s32.totalorder %s28, 1
      %p67 = por %p65, %p66
      %p68 = scmp.ne.s32.totalorder %s59, %s60
      %p69 = scmp.eq.s32.totalorder %s28, 0
      %p70 = por %p68, %p69
      %p71 = scmp.ne.s32.totalorder %s59, %s60
      %p72 = scmp.eq.s32.totalorder %s29, 1
      %p73 = por %p71, %p72
      %p75 = scmp.ne.s32.totalorder %s60, %s74
      %p76 = scmp.eq.s32.totalorder %s29, 0
      %p77 = por %p75, %p76
      %s79 = sadd.s32 %s78, 1
      %p82 = scmp.eq.s32.totalorder %s23, 1
      %p83 = scmp.ne.s32.totalorder %s78, %s80
      %p84 = scmp.eq.s32.totalorder %s23, 0
      %p85 = por %p83, %p84
      %p86 = scmp.ne.s32.totalorder %s78, %s80
      %p87 = scmp.eq.s32.totalorder %s28, 1
      %p88 = por %p86, %p87
      %p89 = scmp.ne.s32.totalorder %s80, %s81
      %p90 = scmp.eq.s32.totalorder %s28, 0
      %p91 = por %p89, %p90
      %p92 = scmp.ne.s32.totalorder %s80, %s81
      %p93 = scmp.eq.s32.totalorder %s29, 1
      %p94 = por %p92, %p93
      %p96 = scmp.ne.s32.totalorder %s81, %s95
      %p97 = scmp.eq.s32.totalorder %s29, 0
      %p98 = por %p96, %p97
      %s100 = sadd.s32 %s99, 1
      %p103 = scmp.eq.s32.totalorder %s23, 1
      %p104 = scmp.ne.s32.totalorder %s99, %s101
      %p105 = scmp.eq.s32.totalorder %s23, 0
      %p106 = por %p104, %p105
      %p107 = scmp.ne.s32.totalorder %s99, %s101
      %p108 = scmp.eq.s32.totalorder %s28, 1
      %p109 = por %p107, %p108
      %p110 = scmp.ne.s32.totalorder %s101, %s102
      %p111 = scmp.eq.s32.totalorder %s28, 0
      %p112 = por %p110, %p111
      %p113 = scmp.ne.s32.totalorder %s101, %s102
      %p114 = scmp.eq.s32.totalorder %s29, 1
      %p115 = por %p113, %p114
      %p117 = scmp.ne.s32.totalorder %s102, %s116
      %p118 = scmp.eq.s32.totalorder %s29, 0
      %p119 = por %p117, %p118
      %s121 = sadd.s32 %s120, 1
      %p124 = scmp.eq.s32.totalorder %s23, 1
      %p125 = scmp.ne.s32.totalorder %s120, %s122
      %p126 = scmp.eq.s32.totalorder %s23, 0
      %p127 = por %p125, %p126
      %p128 = scmp.ne.s32.totalorder %s120, %s122
      %p129 = scmp.eq.s32.totalorder %s28, 1
      %p130 = por %p128, %p129
      %p131 = scmp.ne.s32.totalorder %s122, %s123
      %p132 = scmp.eq.s32.totalorder %s28, 0
      %p133 = por %p131, %p132
      %p134 = scmp.ne.s32.totalorder %s122, %s123
      %p135 = scmp.eq.s32.totalorder %s29, 1
      %p136 = por %p134, %p135
      %p138 = scmp.ne.s32.totalorder %s123, %s137
      %p139 = scmp.eq.s32.totalorder %s29, 0
      %p140 = por %p138, %p139
      %s142 = sadd.s32 %s141, 1
      %p145 = scmp.eq.s32.totalorder %s23, 1
      %p146 = scmp.ne.s32.totalorder %s141, %s143
      %p147 = scmp.eq.s32.totalorder %s23, 0
      %p148 = por %p146, %p147
      %p149 = scmp.ne.s32.totalorder %s141, %s143
      %p150 = scmp.eq.s32.totalorder %s28, 1
      %p151 = por %p149, %p150
      %p152 = scmp.ne.s32.totalorder %s143, %s144
      %p153 = scmp.eq.s32.totalorder %s28, 0
      %p154 = por %p152, %p153
      %p155 = scmp.ne.s32.totalorder %s143, %s144
      %p156 = scmp.eq.s32.totalorder %s29, 1
      %p157 = por %p155, %p156
      %p159 = scmp.ne.s32.totalorder %s144, %s158
      %p160 = scmp.eq.s32.totalorder %s29, 0
      %p161 = por %p159, %p160
      %s163 = sadd.s32 %s162, 1
      %p166 = scmp.eq.s32.totalorder %s23, 1
      %p167 = scmp.ne.s32.totalorder %s162, %s164
      %p168 = scmp.eq.s32.totalorder %s23, 0
      %p169 = por %p167, %p168
      %p170 = scmp.ne.s32.totalorder %s162, %s164
      %p171 = scmp.eq.s32.totalorder %s28, 1
      %p172 = por %p170, %p171
      %p173 = scmp.ne.s32.totalorder %s164, %s165
      %p174 = scmp.eq.s32.totalorder %s28, 0
      %p175 = por %p173, %p174
      %p176 = scmp.ne.s32.totalorder %s164, %s165
      %p177 = scmp.eq.s32.totalorder %s29, 1
      %p178 = por %p176, %p177
      %p180 = scmp.ne.s32.totalorder %s165, %s179
      %p181 = scmp.eq.s32.totalorder %s29, 0
      %p182 = por %p180, %p181
      %s184 = sadd.s32 %s183, 1
      %p187 = scmp.eq.s32.totalorder %s23, 1
      %p188 = scmp.ne.s32.totalorder %s183, %s185
      %p189 = scmp.eq.s32.totalorder %s23, 0
      %p190 = por %p188, %p189
      %p191 = scmp.ne.s32.totalorder %s183, %s185
      %p192 = scmp.eq.s32.totalorder %s28, 1
      %p193 = por %p191, %p192
      %p194 = scmp.ne.s32.totalorder %s185, %s186
      %p195 = scmp.eq.s32.totalorder %s28, 0
      %p196 = por %p194, %p195
      %p197 = scmp.ne.s32.totalorder %s185, %s186
      %p198 = scmp.eq.s32.totalorder %s29, 1
      %p199 = por %p197, %p198
      %p201 = scmp.ne.s32.totalorder %s186, %s200
      %p202 = scmp.eq.s32.totalorder %s29, 0
      %p203 = por %p201, %p202
      %s205 = sadd.s32 %s204, 1
      %p208 = scmp.eq.s32.totalorder %s23, 1
      %p209 = scmp.ne.s32.totalorder %s204, %s206
      %p210 = scmp.eq.s32.totalorder %s23, 0
      %p211 = por %p209, %p210
      %p212 = scmp.ne.s32.totalorder %s204, %s206
      %p213 = scmp.eq.s32.totalorder %s28, 1
      %p214 = por %p212, %p213
      %p215 = scmp.ne.s32.totalorder %s206, %s207
      %p216 = scmp.eq.s32.totalorder %s28, 0
      %p217 = por %p215, %p216
      %p218 = scmp.ne.s32.totalorder %s206, %s207
      %p219 = scmp.eq.s32.totalorder %s29, 1
      %p220 = por %p218, %p219
      %p222 = scmp.ne.s32.totalorder %s207, %s221
      %p223 = scmp.eq.s32.totalorder %s29, 0
      %p224 = por %p222, %p223
      %s225 = ssub.s32 %s23, %s30
      %p226 = scmp.eq.s32.totalorder %s225, 0
      %s228 = sadd.s32 %s227, 1
      %s229 = scalar_select %p226, %s227, %s228
      %p232 = pneg %p226
      %p233 = scmp.eq.s32.totalorder %s23, 1
      %p234 = por %p232, %p233
      %p235 = scmp.ne.s32.totalorder %s227, %s230
      %p236 = scmp.eq.s32.totalorder %s23, 0
      %p237 = por %p235, %p236
      %p238 = scmp.ne.s32.totalorder %s227, %s230
      %p239 = scmp.eq.s32.totalorder %s28, 1
      %p240 = por %p238, %p239
      %p241 = scmp.ne.s32.totalorder %s230, %s231
      %p242 = scmp.eq.s32.totalorder %s28, 0
      %p243 = por %p241, %p242
      %p244 = scmp.ne.s32.totalorder %s230, %s231
      %p245 = scmp.eq.s32.totalorder %s29, 1
      %p246 = por %p244, %p245
      %p248 = scmp.ne.s32.totalorder %s231, %s247
      %p249 = scmp.eq.s32.totalorder %s29, 0
      %p250 = por %p248, %p249
      %p251 = scmp.le.s32.totalorder 1, %s23
      %p252 = scmp.lt.s32.totalorder %s23, 3
      %p253 = pnand %p251, %p252
      %p254 = pneg %p253
      // Predicated region
      $region9: #{tpu_custom_call.1} parent=5 // pred_check
        _
      $region10: #{tpu_custom_call.1} parent=5 // pred_check_branch
        %256 = sbr.rel (%p253) target = $region12
      $region11: #{tpu_custom_call.1} parent=5 // pred_region
        %s257 = ssub.s32 %s23, 1
        // Predicated region
        $region13: #{tpu_custom_call.1} parent=11 // pred_check
          %p258 = pneg %p70
        $region14: #{tpu_custom_call.1} parent=11 // pred_check_branch
          %260 = sbr.rel (%p258) target = $region16
        $region15: #{tpu_custom_call.1} parent=11 // pred_region
          %s262 = ssub.s32 1024, 1024
          %263 = vsyncadd [#allocation6], %s262
          %s264 = sshll.u32 [#allocation5], 4
          %s265 = int_to_ptr.vmem [resolvable:$true] %s264
          %270 = dma.hbm_to_vmem [thread:$0]  %s1, 1024, %s265, [#allocation6], 64, 64, 4
        $region16: #{tpu_custom_call.1} parent=11 // pred_fallthru
          _
        // Predicated region
        $region17: #{tpu_custom_call.1} parent=11 // pred_check
          %p271 = pneg %p91
        $region18: #{tpu_custom_call.1} parent=11 // pred_check_branch
          %273 = sbr.rel (%p271) target = $region20
        $region19: #{tpu_custom_call.1} parent=11 // pred_region
          _
        $region20: #{tpu_custom_call.1} parent=11 // pred_fallthru
          _
        // Predicated region
        $region21: #{tpu_custom_call.1} parent=11 // pred_check
          %p274 = pneg %p112
        $region22: #{tpu_custom_call.1} parent=11 // pred_check_branch
          %276 = sbr.rel (%p274) target = $region24
        $region23: #{tpu_custom_call.1} parent=11 // pred_region
          %s278 = ssub.s32 1024, 1024
          %279 = vsyncadd [#allocation6], %s278
          %s280 = sshll.u32 [#allocation7], 4
          %s281 = int_to_ptr.vmem [resolvable:$true] %s280
          %286 = dma.hbm_to_vmem [thread:$0]  %s3, 1024, %s281, [#allocation6], 64, 64, 4
        $region24: #{tpu_custom_call.1} parent=11 // pred_fallthru
          _
        // Predicated region
        $region25: #{tpu_custom_call.1} parent=11 // pred_check
          %p287 = pneg %p133
        $region26: #{tpu_custom_call.1} parent=11 // pred_check_branch
          %289 = sbr.rel (%p287) target = $region28
        $region27: #{tpu_custom_call.1} parent=11 // pred_region
          _
        $region28: #{tpu_custom_call.1} parent=11 // pred_fallthru
          _
        // Predicated region
        $region29: #{tpu_custom_call.1} parent=11 // pred_check
          %p290 = pneg %p154
        $region30: #{tpu_custom_call.1} parent=11 // pred_check_branch
          %292 = sbr.rel (%p290) target = $region32
        $region31: #{tpu_custom_call.1} parent=11 // pred_region
          %s294 = ssub.s32 1024, 1024
          %295 = vsyncadd [#allocation9], %s294
          %s296 = sshll.u32 [#allocation8], 4
          %s297 = int_to_ptr.vmem [resolvable:$true] %s296
          %302 = dma.hbm_to_vmem [thread:$0]  %s5, 1024, %s297, [#allocation9], 64, 64, 4
        $region32: #{tpu_custom_call.1} parent=11 // pred_fallthru
          _
        // Predicated region
        $region33: #{tpu_custom_call.1} parent=11 // pred_check
          %p303 = pneg %p175
        $region34: #{tpu_custom_call.1} parent=11 // pred_check_branch
          %305 = sbr.rel (%p303) target = $region36
        $region35: #{tpu_custom_call.1} parent=11 // pred_region
          _
        $region36: #{tpu_custom_call.1} parent=11 // pred_fallthru
          _
        // Predicated region
        $region37: #{tpu_custom_call.1} parent=11 // pred_check
          %p306 = pneg %p196
        $region38: #{tpu_custom_call.1} parent=11 // pred_check_branch
          %308 = sbr.rel (%p306) target = $region40
        $region39: #{tpu_custom_call.1} parent=11 // pred_region
          %s310 = ssub.s32 1024, 1024
          %311 = vsyncadd [#allocation9], %s310
          %s312 = sshll.u32 [#allocation10], 4
          %s313 = int_to_ptr.vmem [resolvable:$true] %s312
          %318 = dma.hbm_to_vmem [thread:$0]  %s7, 1024, %s313, [#allocation9], 64, 64, 4
        $region40: #{tpu_custom_call.1} parent=11 // pred_fallthru
          _
        // Predicated region
        $region41: #{tpu_custom_call.1} parent=11 // pred_check
          %p319 = pneg %p217
        $region42: #{tpu_custom_call.1} parent=11 // pred_check_branch
          %321 = sbr.rel (%p319) target = $region44
        $region43: #{tpu_custom_call.1} parent=11 // pred_region
          _
        $region44: #{tpu_custom_call.1} parent=11 // pred_fallthru
          _
      $region12: #{tpu_custom_call.1} parent=5 // pred_fallthru
        _
      %p322 = scmp.lt.s32.totalorder %s23, 2
      // Predicated region
      $region45: #{tpu_custom_call.1} parent=5 // pred_check
        %p323 = pneg %p322
      $region46: #{tpu_custom_call.1} parent=5 // pred_check_branch
        %325 = sbr.rel (%p323) target = $region48
      $region47: #{tpu_custom_call.1} parent=5 // pred_region
        // Predicated region
        $region49: #{tpu_custom_call.1} parent=47 // pred_check
          %p326 = pneg %p43
        $region50: #{tpu_custom_call.1} parent=47 // pred_check_branch
          %328 = sbr.rel (%p326) target = $region52
        $region51: #{tpu_custom_call.1} parent=47 // pred_region
          %s329 = sand.u32 %s33, 1
          %s330 = scalar_lea.sflag [#allocation3], %s329
          %s331 = sand.u32 %s33, 1
          %s332 = smul.addr %s331, 32
          %s333 = scalar_lea.vmem [#allocation2], %s332
          %s334 = smul.u32 4, %s23
          %s336 = ssub.s32 512, 512
          %337 = vsyncadd %s330, %s336
          %s338 = smul.addr %s334, 128
          %s339 = scalar_lea.hbm %s0, %s338
          %s340 = sshll.u32 %s333, 4
          %s341 = int_to_ptr.vmem [resolvable:$true] %s340
          %346 = dma.hbm_to_vmem [thread:$0]  %s339, 512, %s341, %s330, 128, 128, 8
        $region52: #{tpu_custom_call.1} parent=47 // pred_fallthru
          _
      $region48: #{tpu_custom_call.1} parent=5 // pred_fallthru
        _
      %p347 = scmp.le.s32.totalorder 1, %s23
      %p348 = scmp.lt.s32.totalorder %s23, 3
      %p349 = pnand %p347, %p348
      %p350 = pneg %p349
      // Predicated region
      $region53: #{tpu_custom_call.1} parent=5 // pred_check
        _
      $region54: #{tpu_custom_call.1} parent=5 // pred_check_branch
        %352 = sbr.rel (%p349) target = $region56
      $region55: #{tpu_custom_call.1} parent=5 // pred_region
        %s353 = ssub.s32 %s23, 1
        %s354 = sand.u32 %s36, 1
        %s355 = scalar_lea.sflag [#allocation3], %s354
        %s356 = sand.u32 %s36, 1
        %s357 = smul.addr %s356, 32
        %s358 = scalar_lea.vmem [#allocation2], %s357
        // Predicated region
        $region57: #{tpu_custom_call.1} parent=55 // pred_check
          %p359 = pneg %p49
        $region58: #{tpu_custom_call.1} parent=55 // pred_check_branch
          %361 = sbr.rel (%p359) target = $region60
        $region59: #{tpu_custom_call.1} parent=55 // pred_region
          %362 = dma.done %s355, 512
        $region60: #{tpu_custom_call.1} parent=55 // pred_fallthru
          _
        // Predicated region
        $region61: #{tpu_custom_call.1} parent=55 // pred_check
          %p363 = pneg %p70
        $region62: #{tpu_custom_call.1} parent=55 // pred_check_branch
          %365 = sbr.rel (%p363) target = $region64
        $region63: #{tpu_custom_call.1} parent=55 // pred_region
          %366 = dma.done [#allocation6], 1024
        $region64: #{tpu_custom_call.1} parent=55 // pred_fallthru
          _
        // Predicated region
        $region65: #{tpu_custom_call.1} parent=55 // pred_check
          %p367 = pneg %p112
        $region66: #{tpu_custom_call.1} parent=55 // pred_check_branch
          %369 = sbr.rel (%p367) target = $region68
        $region67: #{tpu_custom_call.1} parent=55 // pred_region
          %370 = dma.done [#allocation6], 1024
        $region68: #{tpu_custom_call.1} parent=55 // pred_fallthru
          _
        // Predicated region
        $region69: #{tpu_custom_call.1} parent=55 // pred_check
          %p371 = pneg %p154
        $region70: #{tpu_custom_call.1} parent=55 // pred_check_branch
          %373 = sbr.rel (%p371) target = $region72
        $region71: #{tpu_custom_call.1} parent=55 // pred_region
          %374 = dma.done [#allocation9], 1024
        $region72: #{tpu_custom_call.1} parent=55 // pred_fallthru
          _
        // Predicated region
        $region73: #{tpu_custom_call.1} parent=55 // pred_check
          %p375 = pneg %p196
        $region74: #{tpu_custom_call.1} parent=55 // pred_check_branch
          %377 = sbr.rel (%p375) target = $region76
        $region75: #{tpu_custom_call.1} parent=55 // pred_region
          %378 = dma.done [#allocation9], 1024
        $region76: #{tpu_custom_call.1} parent=55 // pred_fallthru
          _
        %s379 = sand.u32 %s36, 1
        %s380 = scalar_lea.sflag [#allocation3], %s379
        %s381 = sand.u32 %s36, 1
        %s382 = smul.addr %s381, 32
        %s383 = scalar_lea.vmem [#allocation2], %s382
        %p384 = pneg %p49
        %p385 = pneg %p46
        %p386 = pneg %p70
        %p387 = pneg %p67
        %p388 = pneg %p91
        %p389 = pneg %p88
        %p390 = pneg %p112
        %p391 = pneg %p109
        %p392 = pneg %p133
        %p393 = pneg %p130
        %p394 = pneg %p154
        %p395 = pneg %p151
        %p396 = pneg %p175
        %p397 = pneg %p172
        %p398 = pneg %p196
        %p399 = pneg %p193
        %p400 = pneg %p217
        %p401 = pneg %p214
        %p402 = pneg %p243
        %p403 = pneg %p240
        %s404 = sand.u32 %s230, 1
        %s405 = scalar_lea.sflag [#allocation4], %s404
        %s406 = sand.u32 %s230, 1
        %s407 = smul.addr %s406, 32
        %s408 = scalar_lea.vmem [#allocation11], %s407
        %s409 = smul.u32 4, %s28
        %s410 = smul.u32 4, %s28
        %v412 = vld [vmem:[%s358] sm:$0xff]
        %v413 = vld [vmem:[%s358 + $0x8] sm:$0xff]
        %v414 = vld [vmem:[%s358 + $0x10] sm:$0xff]
        %v415 = vld [vmem:[%s358 + $0x18] sm:$0xff]
        %v416 = vld [vmem:[#allocation5] sm:$0xf]
        %v417 = vld [vmem:[#allocation5 + $0x4] sm:$0xf]
        %v418 = vld [vmem:[#allocation5 + $0x8] sm:$0xf]
        %v419 = vld [vmem:[#allocation5 + $0xc] sm:$0xf]
        %v420 = vld [vmem:[#allocation5 + $0x10] sm:$0xf]
        %v421 = vld [vmem:[#allocation5 + $0x14] sm:$0xf]
        %v422 = vld [vmem:[#allocation5 + $0x18] sm:$0xf]
        %v423 = vld [vmem:[#allocation5 + $0x1c] sm:$0xf]
        %v424 = vld [vmem:[#allocation5 + $0x20] sm:$0xf]
        %v425 = vld [vmem:[#allocation5 + $0x24] sm:$0xf]
        %v426 = vld [vmem:[#allocation5 + $0x28] sm:$0xf]
        %v427 = vld [vmem:[#allocation5 + $0x2c] sm:$0xf]
        %v428 = vld [vmem:[#allocation5 + $0x30] sm:$0xf]
        %v429 = vld [vmem:[#allocation5 + $0x34] sm:$0xf]
        %v430 = vld [vmem:[#allocation5 + $0x38] sm:$0xf]
        %v431 = vld [vmem:[#allocation5 + $0x3c] sm:$0xf]
        %v432 = vld [vmem:[%s2] sm:$0x1]
        %v433 = vpack.c.bf16 %v413, %v412
        %v434 = vpack.c.bf16 %v415, %v414
        %v436 = vlaneseq
        %v437 = vshrl.u32 %v436, 7
        %v438 = vsub.s32 0, %v437
        %v439 = vrot.slane %v432, %v438
        %v457 = vunpack.c.l.b16 %v416
        %v458 = vunpack.c.l.b16 %v417
        %v459 = vunpack.c.l.b16 %v418
        %v460 = vunpack.c.l.b16 %v419
        %v461 = vunpack.c.l.b16 %v420
        %v462 = vunpack.c.l.b16 %v421
        %v463 = vunpack.c.l.b16 %v422
        %v464 = vunpack.c.l.b16 %v423
        %v465 = vunpack.c.l.b16 %v424
        %v466 = vunpack.c.l.b16 %v425
        %v467 = vunpack.c.l.b16 %v426
        %v468 = vunpack.c.l.b16 %v427
        %v469 = vunpack.c.l.b16 %v428
        %v470 = vunpack.c.l.b16 %v429
        %v471 = vunpack.c.l.b16 %v430
        %v472 = vunpack.c.l.b16 %v431
        %v473 = vpack.c.b16 %v458, %v457
        %v474 = vpack.c.b16 %v460, %v459
        %v475 = vpack.c.b16 %v462, %v461
        %v476 = vpack.c.b16 %v464, %v463
        %v477 = vpack.c.b16 %v466, %v465
        %v478 = vpack.c.b16 %v468, %v467
        %v479 = vpack.c.b16 %v470, %v469
        %v480 = vpack.c.b16 %v472, %v471
        %489 = vmatprep.subr.bf16.mxu0 0
        %490 = vmatpush1.bf16.msra.mxu0 %v480
        %491 = vmatprep.subr.bf16.mxu0 0
        %492 = vmatpush1.bf16.msra.mxu0 %v479
        %493 = vmatprep.subr.bf16.mxu0 0
        %494 = vmatpush1.bf16.msra.mxu0 %v478
        %495 = vmatprep.subr.bf16.mxu0 0
        %496 = vmatpush1.bf16.msra.mxu0 %v477
        %497 = vmatprep.subr.bf16.mxu0 0
        %498 = vmatpush1.bf16.msra.mxu0 %v476
        %499 = vmatprep.subr.bf16.mxu0 0
        %500 = vmatpush1.bf16.msra.mxu0 %v475
        %501 = vmatprep.subr.bf16.mxu0 0
        %502 = vmatpush1.bf16.msra.mxu0 %v474
        %503 = vmatprep.subr.bf16.mxu0 0
        %504 = vmatpush1.bf16.msra.mxu0 %v473
        %505 = vmatprep.subr.bf16.mxu0 0
        %506 = vmatpush2.bf16.msra.mxu0 0
        %507 = vmatprep.subr.bf16.mxu0 0
        %508 = vmatpush2.bf16.msra.mxu0 0
        %509 = vmatprep.subr.bf16.mxu0 0
        %510 = vmatpush2.bf16.msra.mxu0 0
        %511 = vmatprep.subr.bf16.mxu0 0
        %512 = vmatpush2.bf16.msra.mxu0 0
        %513 = vmatprep.subr.bf16.mxu0 0
        %514 = vmatpush2.bf16.msra.mxu0 0
        %515 = vmatprep.subr.bf16.mxu0 0
        %516 = vmatpush2.bf16.msra.mxu0 0
        %517 = vmatprep.subr.bf16.mxu0 0
        %518 = vmatpush2.bf16.msra.mxu0 0
        %519 = vmatprep.subr.bf16.mxu0 0
        %520 = vmatpush2.bf16.msra.mxu0 0
        %521 = vmatprep.mubr.bf16.mxu0 0
        %522 = vmatmul.mubr.bf16.gmra.mxu0 %v433
        %v523 = vpop.f32.mrf.mxu0
        %v524 = vadd.f32 %v439, %v523
        %v525 = vpop.f32.mrf.mxu0
        %v526 = vpop.f32.mrf.mxu0
        %v527 = vadd.f32 %v439, %v526
        %v528 = vpop.f32.mrf.mxu0
        %529 = vmatprep.mubr.bf16.mxu0 0
        %530 = vmatmul.mubr.bf16.gmra.mxu0 %v434
        %v531 = vpop.f32.mrf.mxu0
        %v532 = vadd.f32 %v439, %v531
        %v533 = vpop.f32.mrf.mxu0
        %v534 = vpop.f32.mrf.mxu0
        %v535 = vadd.f32 %v439, %v534
        %v536 = vpop.f32.mrf.mxu0
        %537 = vdwg.mxu0
        %v538 = vmax.f32 %v524, 0.0
        %v539 = vmax.f32 %v527, 0.0
        %v540 = vmax.f32 %v532, 0.0
        %v541 = vmax.f32 %v535, 0.0
        %v542 = vld [vmem:[#allocation7] sm:$0xf]
        %v543 = vld [vmem:[#allocation7 + $0x4] sm:$0xf]
        %v544 = vld [vmem:[#allocation7 + $0x8] sm:$0xf]
        %v545 = vld [vmem:[#allocation7 + $0xc] sm:$0xf]
        %v546 = vld [vmem:[#allocation7 + $0x10] sm:$0xf]
        %v547 = vld [vmem:[#allocation7 + $0x14] sm:$0xf]
        %v548 = vld [vmem:[#allocation7 + $0x18] sm:$0xf]
        %v549 = vld [vmem:[#allocation7 + $0x1c] sm:$0xf]
        %v550 = vld [vmem:[#allocation7 + $0x20] sm:$0xf]
        %v551 = vld [vmem:[#allocation7 + $0x24] sm:$0xf]
        %v552 = vld [vmem:[#allocation7 + $0x28] sm:$0xf]
        %v553 = vld [vmem:[#allocation7 + $0x2c] sm:$0xf]
        %v554 = vld [vmem:[#allocation7 + $0x30] sm:$0xf]
        %v555 = vld [vmem:[#allocation7 + $0x34] sm:$0xf]
        %v556 = vld [vmem:[#allocation7 + $0x38] sm:$0xf]
        %v557 = vld [vmem:[#allocation7 + $0x3c] sm:$0xf]
        %v558 = vld [vmem:[%s4] sm:$0x1]
        %v559 = vpack.c.bf16 %v539, %v538
        %v560 = vpack.c.bf16 %v541, %v540
        %v562 = vlaneseq
        %v563 = vshrl.u32 %v562, 7
        %v564 = vsub.s32 0, %v563
        %v565 = vrot.slane %v558, %v564
        %v583 = vunpack.c.l.b16 %v542
        %v584 = vunpack.c.l.b16 %v543
        %v585 = vunpack.c.l.b16 %v544
        %v586 = vunpack.c.l.b16 %v545
        %v587 = vunpack.c.l.b16 %v546
        %v588 = vunpack.c.l.b16 %v547
        %v589 = vunpack.c.l.b16 %v548
        %v590 = vunpack.c.l.b16 %v549
        %v591 = vunpack.c.l.b16 %v550
        %v592 = vunpack.c.l.b16 %v551
        %v593 = vunpack.c.l.b16 %v552
        %v594 = vunpack.c.l.b16 %v553
        %v595 = vunpack.c.l.b16 %v554
        %v596 = vunpack.c.l.b16 %v555
        %v597 = vunpack.c.l.b16 %v556
        %v598 = vunpack.c.l.b16 %v557
        %v599 = vpack.c.b16 %v584, %v583
        %v600 = vpack.c.b16 %v586, %v585
        %v601 = vpack.c.b16 %v588, %v587
        %v602 = vpack.c.b16 %v590, %v589
        %v603 = vpack.c.b16 %v592, %v591
        %v604 = vpack.c.b16 %v594, %v593
        %v605 = vpack.c.b16 %v596, %v595
        %v606 = vpack.c.b16 %v598, %v597
        %615 = vmatprep.subr.bf16.mxu0 0
        %616 = vmatpush1.bf16.msra.mxu0 %v606
        %617 = vmatprep.subr.bf16.mxu0 0
        %618 = vmatpush1.bf16.msra.mxu0 %v605
        %619 = vmatprep.subr.bf16.mxu0 0
        %620 = vmatpush1.bf16.msra.mxu0 %v604
        %621 = vmatprep.subr.bf16.mxu0 0
        %622 = vmatpush1.bf16.msra.mxu0 %v603
        %623 = vmatprep.subr.bf16.mxu0 0
        %624 = vmatpush1.bf16.msra.mxu0 %v602
        %625 = vmatprep.subr.bf16.mxu0 0
        %626 = vmatpush1.bf16.msra.mxu0 %v601
        %627 = vmatprep.subr.bf16.mxu0 0
        %628 = vmatpush1.bf16.msra.mxu0 %v600
        %629 = vmatprep.subr.bf16.mxu0 0
        %630 = vmatpush1.bf16.msra.mxu0 %v599
        %631 = vmatprep.subr.bf16.mxu0 0
        %632 = vmatpush2.bf16.msra.mxu0 0
        %633 = vmatprep.subr.bf16.mxu0 0
        %634 = vmatpush2.bf16.msra.mxu0 0
        %635 = vmatprep.subr.bf16.mxu0 0
        %636 = vmatpush2.bf16.msra.mxu0 0
        %637 = vmatprep.subr.bf16.mxu0 0
        %638 = vmatpush2.bf16.msra.mxu0 0
        %639 = vmatprep.subr.bf16.mxu0 0
        %640 = vmatpush2.bf16.msra.mxu0 0
        %641 = vmatprep.subr.bf16.mxu0 0
        %642 = vmatpush2.bf16.msra.mxu0 0
        %643 = vmatprep.subr.bf16.mxu0 0
        %644 = vmatpush2.bf16.msra.mxu0 0
        %645 = vmatprep.subr.bf16.mxu0 0
        %646 = vmatpush2.bf16.msra.mxu0 0
        %647 = vmatprep.mubr.bf16.mxu0 0
        %648 = vmatmul.mubr.bf16.gmra.mxu0 %v559
        %v649 = vpop.f32.mrf.mxu0
        %v650 = vadd.f32 %v565, %v649
        %v651 = vpop.f32.mrf.mxu0
        %v652 = vpop.f32.mrf.mxu0
        %v653 = vadd.f32 %v565, %v652
        %v654 = vpop.f32.mrf.mxu0
        %655 = vmatprep.mubr.bf16.mxu0 0
        %656 = vmatmul.mubr.bf16.gmra.mxu0 %v560
        %v657 = vpop.f32.mrf.mxu0
        %v658 = vadd.f32 %v565, %v657
        %v659 = vpop.f32.mrf.mxu0
        %v660 = vpop.f32.mrf.mxu0
        %v661 = vadd.f32 %v565, %v660
        %v662 = vpop.f32.mrf.mxu0
        %663 = vdwg.mxu0
        %v664 = vmax.f32 %v650, 0.0
        %v665 = vmax.f32 %v653, 0.0
        %v666 = vmax.f32 %v658, 0.0
        %v667 = vmax.f32 %v661, 0.0
        %v668 = vld [vmem:[#allocation8] sm:$0xf]
        %v669 = vld [vmem:[#allocation8 + $0x4] sm:$0xf]
        %v670 = vld [vmem:[#allocation8 + $0x8] sm:$0xf]
        %v671 = vld [vmem:[#allocation8 + $0xc] sm:$0xf]
        %v672 = vld [vmem:[#allocation8 + $0x10] sm:$0xf]
        %v673 = vld [vmem:[#allocation8 + $0x14] sm:$0xf]
        %v674 = vld [vmem:[#allocation8 + $0x18] sm:$0xf]
        %v675 = vld [vmem:[#allocation8 + $0x1c] sm:$0xf]
        %v676 = vld [vmem:[#allocation8 + $0x20] sm:$0xf]
        %v677 = vld [vmem:[#allocation8 + $0x24] sm:$0xf]
        %v678 = vld [vmem:[#allocation8 + $0x28] sm:$0xf]
        %v679 = vld [vmem:[#allocation8 + $0x2c] sm:$0xf]
        %v680 = vld [vmem:[#allocation8 + $0x30] sm:$0xf]
        %v681 = vld [vmem:[#allocation8 + $0x34] sm:$0xf]
        %v682 = vld [vmem:[#allocation8 + $0x38] sm:$0xf]
        %v683 = vld [vmem:[#allocation8 + $0x3c] sm:$0xf]
        %v684 = vld [vmem:[%s6] sm:$0x1]
        %v685 = vpack.c.bf16 %v665, %v664
        %v686 = vpack.c.bf16 %v667, %v666
        %v688 = vlaneseq
        %v689 = vshrl.u32 %v688, 7
        %v690 = vsub.s32 0, %v689
        %v691 = vrot.slane %v684, %v690
        %v709 = vunpack.c.l.b16 %v668
        %v710 = vunpack.c.l.b16 %v669
        %v711 = vunpack.c.l.b16 %v670
        %v712 = vunpack.c.l.b16 %v671
        %v713 = vunpack.c.l.b16 %v672
        %v714 = vunpack.c.l.b16 %v673
        %v715 = vunpack.c.l.b16 %v674
        %v716 = vunpack.c.l.b16 %v675
        %v717 = vunpack.c.l.b16 %v676
        %v718 = vunpack.c.l.b16 %v677
        %v719 = vunpack.c.l.b16 %v678
        %v720 = vunpack.c.l.b16 %v679
        %v721 = vunpack.c.l.b16 %v680
        %v722 = vunpack.c.l.b16 %v681
        %v723 = vunpack.c.l.b16 %v682
        %v724 = vunpack.c.l.b16 %v683
        %v725 = vpack.c.b16 %v710, %v709
        %v726 = vpack.c.b16 %v712, %v711
        %v727 = vpack.c.b16 %v714, %v713
        %v728 = vpack.c.b16 %v716, %v715
        %v729 = vpack.c.b16 %v718, %v717
        %v730 = vpack.c.b16 %v720, %v719
        %v731 = vpack.c.b16 %v722, %v721
        %v732 = vpack.c.b16 %v724, %v723
        %741 = vmatprep.subr.bf16.mxu0 0
        %742 = vmatpush1.bf16.msra.mxu0 %v732
        %743 = vmatprep.subr.bf16.mxu0 0
        %744 = vmatpush1.bf16.msra.mxu0 %v731
        %745 = vmatprep.subr.bf16.mxu0 0
        %746 = vmatpush1.bf16.msra.mxu0 %v730
        %747 = vmatprep.subr.bf16.mxu0 0
        %748 = vmatpush1.bf16.msra.mxu0 %v729
        %749 = vmatprep.subr.bf16.mxu0 0
        %750 = vmatpush1.bf16.msra.mxu0 %v728
        %751 = vmatprep.subr.bf16.mxu0 0
        %752 = vmatpush1.bf16.msra.mxu0 %v727
        %753 = vmatprep.subr.bf16.mxu0 0
        %754 = vmatpush1.bf16.msra.mxu0 %v726
        %755 = vmatprep.subr.bf16.mxu0 0
        %756 = vmatpush1.bf16.msra.mxu0 %v725
        %757 = vmatprep.subr.bf16.mxu0 0
        %758 = vmatpush2.bf16.msra.mxu0 0
        %759 = vmatprep.subr.bf16.mxu0 0
        %760 = vmatpush2.bf16.msra.mxu0 0
        %761 = vmatprep.subr.bf16.mxu0 0
        %762 = vmatpush2.bf16.msra.mxu0 0
        %763 = vmatprep.subr.bf16.mxu0 0
        %764 = vmatpush2.bf16.msra.mxu0 0
        %765 = vmatprep.subr.bf16.mxu0 0
        %766 = vmatpush2.bf16.msra.mxu0 0
        %767 = vmatprep.subr.bf16.mxu0 0
        %768 = vmatpush2.bf16.msra.mxu0 0
        %769 = vmatprep.subr.bf16.mxu0 0
        %770 = vmatpush2.bf16.msra.mxu0 0
        %771 = vmatprep.subr.bf16.mxu0 0
        %772 = vmatpush2.bf16.msra.mxu0 0
        %773 = vmatprep.mubr.bf16.mxu0 0
        %774 = vmatmul.mubr.bf16.gmra.mxu0 %v685
        %v775 = vpop.f32.mrf.mxu0
        %v776 = vadd.f32 %v691, %v775
        %v777 = vpop.f32.mrf.mxu0
        %v778 = vpop.f32.mrf.mxu0
        %v779 = vadd.f32 %v691, %v778
        %v780 = vpop.f32.mrf.mxu0
        %781 = vmatprep.mubr.bf16.mxu0 0
        %782 = vmatmul.mubr.bf16.gmra.mxu0 %v686
        %v783 = vpop.f32.mrf.mxu0
        %v784 = vadd.f32 %v691, %v783
        %v785 = vpop.f32.mrf.mxu0
        %v786 = vpop.f32.mrf.mxu0
        %v787 = vadd.f32 %v691, %v786
        %v788 = vpop.f32.mrf.mxu0
        %789 = vdwg.mxu0
        %v790 = vmax.f32 %v776, 0.0
        %v791 = vmax.f32 %v779, 0.0
        %v792 = vmax.f32 %v784, 0.0
        %v793 = vmax.f32 %v787, 0.0
        %v794 = vld [vmem:[#allocation10] sm:$0xf]
        %v795 = vld [vmem:[#allocation10 + $0x4] sm:$0xf]
        %v796 = vld [vmem:[#allocation10 + $0x8] sm:$0xf]
        %v797 = vld [vmem:[#allocation10 + $0xc] sm:$0xf]
        %v798 = vld [vmem:[#allocation10 + $0x10] sm:$0xf]
        %v799 = vld [vmem:[#allocation10 + $0x14] sm:$0xf]
        %v800 = vld [vmem:[#allocation10 + $0x18] sm:$0xf]
        %v801 = vld [vmem:[#allocation10 + $0x1c] sm:$0xf]
        %v802 = vld [vmem:[#allocation10 + $0x20] sm:$0xf]
        %v803 = vld [vmem:[#allocation10 + $0x24] sm:$0xf]
        %v804 = vld [vmem:[#allocation10 + $0x28] sm:$0xf]
        %v805 = vld [vmem:[#allocation10 + $0x2c] sm:$0xf]
        %v806 = vld [vmem:[#allocation10 + $0x30] sm:$0xf]
        %v807 = vld [vmem:[#allocation10 + $0x34] sm:$0xf]
        %v808 = vld [vmem:[#allocation10 + $0x38] sm:$0xf]
        %v809 = vld [vmem:[#allocation10 + $0x3c] sm:$0xf]
        %v810 = vld [vmem:[%s8] sm:$0x1]
        %v811 = vpack.c.bf16 %v791, %v790
        %v812 = vpack.c.bf16 %v793, %v792
        %v814 = vlaneseq
        %v815 = vshrl.u32 %v814, 7
        %v816 = vsub.s32 0, %v815
        %v817 = vrot.slane %v810, %v816
        %v835 = vunpack.c.l.b16 %v794
        %v836 = vunpack.c.l.b16 %v795
        %v837 = vunpack.c.l.b16 %v796
        %v838 = vunpack.c.l.b16 %v797
        %v839 = vunpack.c.l.b16 %v798
        %v840 = vunpack.c.l.b16 %v799
        %v841 = vunpack.c.l.b16 %v800
        %v842 = vunpack.c.l.b16 %v801
        %v843 = vunpack.c.l.b16 %v802
        %v844 = vunpack.c.l.b16 %v803
        %v845 = vunpack.c.l.b16 %v804
        %v846 = vunpack.c.l.b16 %v805
        %v847 = vunpack.c.l.b16 %v806
        %v848 = vunpack.c.l.b16 %v807
        %v849 = vunpack.c.l.b16 %v808
        %v850 = vunpack.c.l.b16 %v809
        %v851 = vpack.c.b16 %v836, %v835
        %v852 = vpack.c.b16 %v838, %v837
        %v853 = vpack.c.b16 %v840, %v839
        %v854 = vpack.c.b16 %v842, %v841
        %v855 = vpack.c.b16 %v844, %v843
        %v856 = vpack.c.b16 %v846, %v845
        %v857 = vpack.c.b16 %v848, %v847
        %v858 = vpack.c.b16 %v850, %v849
        %867 = vmatprep.subr.bf16.mxu0 0
        %868 = vmatpush1.bf16.msra.mxu0 %v858
        %869 = vmatprep.subr.bf16.mxu0 0
        %870 = vmatpush1.bf16.msra.mxu0 %v857
        %871 = vmatprep.subr.bf16.mxu0 0
        %872 = vmatpush1.bf16.msra.mxu0 %v856
        %873 = vmatprep.subr.bf16.mxu0 0
        %874 = vmatpush1.bf16.msra.mxu0 %v855
        %875 = vmatprep.subr.bf16.mxu0 0
        %876 = vmatpush1.bf16.msra.mxu0 %v854
        %877 = vmatprep.subr.bf16.mxu0 0
        %878 = vmatpush1.bf16.msra.mxu0 %v853
        %879 = vmatprep.subr.bf16.mxu0 0
        %880 = vmatpush1.bf16.msra.mxu0 %v852
        %881 = vmatprep.subr.bf16.mxu0 0
        %882 = vmatpush1.bf16.msra.mxu0 %v851
        %883 = vmatprep.subr.bf16.mxu0 0
        %884 = vmatpush2.bf16.msra.mxu0 0
        %885 = vmatprep.subr.bf16.mxu0 0
        %886 = vmatpush2.bf16.msra.mxu0 0
        %887 = vmatprep.subr.bf16.mxu0 0
        %888 = vmatpush2.bf16.msra.mxu0 0
        %889 = vmatprep.subr.bf16.mxu0 0
        %890 = vmatpush2.bf16.msra.mxu0 0
        %891 = vmatprep.subr.bf16.mxu0 0
        %892 = vmatpush2.bf16.msra.mxu0 0
        %893 = vmatprep.subr.bf16.mxu0 0
        %894 = vmatpush2.bf16.msra.mxu0 0
        %895 = vmatprep.subr.bf16.mxu0 0
        %896 = vmatpush2.bf16.msra.mxu0 0
        %897 = vmatprep.subr.bf16.mxu0 0
        %898 = vmatpush2.bf16.msra.mxu0 0
        %899 = vmatprep.mubr.bf16.mxu0 0
        %900 = vmatmul.mubr.bf16.gmra.mxu0 %v811
        %v901 = vpop.f32.mrf.mxu0
        %v902 = vadd.f32 %v817, %v901
        %v903 = vpop.f32.mrf.mxu0
        %v904 = vpop.f32.mrf.mxu0
        %v905 = vadd.f32 %v817, %v904
        %v906 = vpop.f32.mrf.mxu0
        %907 = vmatprep.mubr.bf16.mxu0 0
        %908 = vmatmul.mubr.bf16.gmra.mxu0 %v812
        %v909 = vpop.f32.mrf.mxu0
        %v910 = vadd.f32 %v817, %v909
        %v911 = vpop.f32.mrf.mxu0
        %v912 = vpop.f32.mrf.mxu0
        %v913 = vadd.f32 %v817, %v912
        %v914 = vpop.f32.mrf.mxu0
        %915 = vdwg.mxu0
        %916 = vst [vmem:[%s408] sm:$0xff] %v902
        %917 = vst [vmem:[%s408 + $0x8] sm:$0xff] %v905
        %918 = vst [vmem:[%s408 + $0x10] sm:$0xff] %v910
        %919 = vst [vmem:[%s408 + $0x18] sm:$0xff] %v913
        %s920 = sand.u32 %s230, 1
        %s921 = scalar_lea.sflag [#allocation4], %s920
        %s922 = sand.u32 %s230, 1
        %s923 = smul.addr %s922, 32
        %s924 = scalar_lea.vmem [#allocation11], %s923
        // Predicated region
        $region77: #{tpu_custom_call.1} parent=55 // pred_check
          %p925 = pneg %p240
        $region78: #{tpu_custom_call.1} parent=55 // pred_check_branch
          %927 = sbr.rel (%p925) target = $region80
        $region79: #{tpu_custom_call.1} parent=55 // pred_region
          %s928 = smul.u32 4, %s28
          %s930 = ssub.s32 512, 512
          %931 = vsyncadd %s921, %s930
          %s932 = smul.addr %s928, 128
          %s933 = scalar_lea.hbm %s9, %s932
          %s934 = sshll.u32 %s924, 4
          %s935 = int_to_ptr.vmem [resolvable:$true] %s934
          %940 = dma.vmem_to_hbm [thread:$0]  %s935, 512, %s933, %s921, 128, 128, 8
        $region80: #{tpu_custom_call.1} parent=55 // pred_fallthru
          _
      $region56: #{tpu_custom_call.1} parent=5 // pred_fallthru
        _
      %p941 = scmp.le.s32.totalorder 2, %s23
      // Predicated region
      $region81: #{tpu_custom_call.1} parent=5 // pred_check
        %p942 = pneg %p941
      $region82: #{tpu_custom_call.1} parent=5 // pred_check_branch
        %944 = sbr.rel (%p942) target = $region84
      $region83: #{tpu_custom_call.1} parent=5 // pred_region
        %s945 = ssub.s32 %s23, 2
        // Predicated region
        $region85: #{tpu_custom_call.1} parent=83 // pred_check
          %p946 = pneg %p246
        $region86: #{tpu_custom_call.1} parent=83 // pred_check_branch
          %948 = sbr.rel (%p946) target = $region88
        $region87: #{tpu_custom_call.1} parent=83 // pred_region
          %s949 = sand.u32 %s231, 1
          %s950 = scalar_lea.sflag [#allocation4], %s949
          %s951 = sand.u32 %s231, 1
          %s952 = smul.addr %s951, 32
          %s953 = scalar_lea.vmem [#allocation11], %s952
          %954 = dma.done %s950, 512
        $region88: #{tpu_custom_call.1} parent=83 // pred_fallthru
          _
      $region84: #{tpu_custom_call.1} parent=5 // pred_fallthru
        _
    $region6: #{tpu_custom_call.1} parent=1 // loop_footer
      %s27 = sadd.s32 1, %s23
    $region7: #{tpu_custom_call.1} parent=1 // loop_footer_branch
      %22 = sbr.rel target = $region3
    $region8: #{tpu_custom_call.1} parent=1 // loop_exit
      _
    %955 = vsyncpa [#allocation3], 1
    %s956 = scalar_lea.sflag [#allocation3], 1
    %957 = vsyncpa %s956, 1
    %958 = vsyncpa [#allocation6], 1
    %959 = vsyncpa [#allocation9], 1
    %960 = vsyncpa [#allocation4], 1
    %s961 = scalar_lea.sflag [#allocation4], 1
    %962 = vsyncpa %s961, 1

</llo_original>
